<compile_context>
chip_gen: v5e
topology: v5e:2x2
jax: 0.10.0
libtpu: 0.0.40
codegen_flags: <defaults>
</compile_context>

<pallas_src>
import functools
import math

import jax
import jax.numpy as jnp
from jax.experimental import pallas as pl
from jax.experimental.pallas import tpu as pltpu

LANES = 128
SUBLANES = 8
MAX_BLOCK_ROWS = 8192          # hard cap: 8192 x 128 x 4B = 4 MiB per f32 tile


def _round_up(v, m):
    return -(-v // m) * m


def _vmem_budget_bytes():
    """Per-step double-buffered working-set budget, per TPU generation.

    v5e defaults to a 16 MiB scoped-VMEM window -> keep the pipelined working
    set <= 12 MiB.  v6e / v7x default to a 32 MiB window (v7x physical VMEM is
    64 MiB) -> 24 MiB.  Unknown chips fall back to the conservative bound so we
    never need a vmem_limit_bytes override.
    """
    try:
        kind = jax.devices()[0].device_kind.lower()
    except Exception:
        kind = ""
    if ("v6" in kind) or ("v7" in kind):
        return 24 << 20
    return 12 << 20


def _choose_tiling(rows, bytes_per_row):
    """Pick (n_par, inner, block_rows).

    n_par: megacore split (2 keeps both v7x TensorCores loaded with balanced
    per-core block counts; v5e/v6e simply run the two slices back-to-back).
    inner: number of 'arbitrary' steps per parallel slice.
    block_rows: multiple of SUBLANES sized so the double-buffered working set
    (bytes_per_row covers all pipelined arrays) fits the scoped-VMEM budget.
    """
    max_rows = _vmem_budget_bytes() // (2 * bytes_per_row)       # 2x: double buffer
    max_rows = max(SUBLANES, min(MAX_BLOCK_ROWS,
                                 (max_rows // SUBLANES) * SUBLANES))

    n_par = 2 if rows >= 2 * SUBLANES else 1
    per_core = _round_up(pl.cdiv(rows, n_par), SUBLANES)
    inner = pl.cdiv(per_core, max_rows)
    block_rows = _round_up(pl.cdiv(per_core, inner), SUBLANES)
    block_rows = min(block_rows, rows)        # tiny input: one full-extent block
    if block_rows == rows:
        n_par, inner = 1, 1
    return n_par, inner, block_rows


# ---------------------------------------------------------------------------
# Shared loss math (runs on the VPU inside the kernels)
# ---------------------------------------------------------------------------
def _hinge_fn(hinge):
    if hinge == 'ReLU':
        return lambda v: jnp.maximum(v, 0.0)
    elif hinge == 'LeakyReLU':
        # torch.nn.LeakyReLU default negative_slope = 0.01
        return lambda v: jnp.where(v >= 0.0, v, 0.01 * v)
    raise ValueError('please select hinge from (ReLU, LeakyReLU)')


def _compute_loss(x, y, *, a0, a1, b1, beta, margin, hinge):
    h = _hinge_fn(hinge)
    # loss0 = (1 - label) * a0 * hinge(logits + margin)
    loss0 = (1.0 - y) * a0 * h(x + margin)
    # loss1 = label * (a1 * l1 + b1 * ((l1 + 1)^beta - 1))
    l1 = h(-x + margin)
    base = l1 + 1.0
    if float(beta).is_integer():
        ib = int(beta)
        if ib == 2:
            pw = base * base                      # 1 VALU mul, no EUP
        else:
            pw = jax.lax.integer_pow(base, ib)    # repeated multiplies
    else:
        pw = jnp.power(base, beta)                # exp/log only for non-int beta
    loss1 = y * (a1 * l1 + b1 * (pw - 1.0))
    return loss0 + loss1


# ---------------------------------------------------------------------------
# Kernels
# ---------------------------------------------------------------------------
def _filter_loss_kernel(x_ref, y_ref, out_ref, *,
                        a0, a1, b1, beta, margin, hinge):
    # Cast to f32 in-kernel (free on VPU); inputs arrive in native dtype.
    x = x_ref[...].astype(jnp.float32)
    y = y_ref[...].astype(jnp.float32)
    loss = _compute_loss(x, y, a0=a0, a1=a1, b1=b1, beta=beta,
                         margin=margin, hinge=hinge)
    out_ref[...] = loss.astype(out_ref.dtype)


def _filter_loss_sum_kernel(x_ref, y_ref, out_ref, *,
                            a0, a1, b1, beta, margin, hinge,
                            rows, block_rows, inner, acc_rows):
    p = pl.program_id(0)        # parallel (per-TensorCore) slice
    i = pl.program_id(1)        # arbitrary (reduction) step within the slice

    @pl.when(i == 0)
    def _():
        out_ref[...] = jnp.zeros_like(out_ref)

    x = x_ref[...].astype(jnp.float32)
    y = y_ref[...].astype(jnp.float32)
    loss = _compute_loss(x, y, a0=a0, a1=a1, b1=b1, beta=beta,
                         margin=margin, hinge=hinge)

    def _partial(v):
        if acc_rows == SUBLANES:
            # Keep the (8, 128) vreg shape: reduce over the leading vreg
            # groups only -> pure cross-vreg VALU adds, no XLU work.
            return v.reshape(-1, SUBLANES, LANES).sum(axis=0)[None]
        # Tiny single-block fallback (block_rows < 8): sublane reduce is fine.
        return v.sum(axis=0, keepdims=True)[None]

    block_start = (p * inner + i) * block_rows
    is_full = block_start + block_rows <= rows

    @pl.when(is_full)
    def _():
        out_ref[...] += _partial(loss)

    # Only the ragged tail block(s) pay for the row mask (also covers clamped
    # duplicate blocks on uneven block counts, whose `valid` is <= 0).  The
    # bound is row-level, so there is no i32 flat-index overflow hazard.
    @pl.when(jnp.logical_not(is_full))
    def _():
        valid = rows - block_start
        rid = jax.lax.broadcasted_iota(jnp.int32, loss.shape, 0)
        # NOTE: select (not multiply) so garbage rows never reach the sum,
        # even if they produced inf/nan inside _compute_loss.
        out_ref[...] += _partial(jnp.where(rid < valid, loss, 0.0))


# ---------------------------------------------------------------------------
# Wrapper (matches FilterLossWithLogits.forward semantics)
# ---------------------------------------------------------------------------
def filter_loss_with_logits(logits, label, mask=None, *,
                            a0=0.1, a1=None, b1=1.0, beta=2.0,
                            margin=1.0, reduction='none', hinge='ReLU'):
    assert logits.shape == label.shape, (
        f'logits.shape{logits.shape} != label.shape{label.shape}')
    if mask is not None:
        # TODO(synk): boolean-mask indexing (logits[mask]) yields a dynamic
        # shape with no clean Pallas equivalent; only mask=None is supported.
        raise NotImplementedError('mask path not supported in Pallas kernel')

    a1 = (1.0 - a0) if a1 is None else a1

    orig_shape = logits.shape
    # Torch-style result dtype: promote(logits, label), floored at float32.
    out_dtype = jnp.promote_types(logits.dtype, label.dtype)
    if not jnp.issubdtype(out_dtype, jnp.floating):
        out_dtype = jnp.float32

    n = math.prod(orig_shape)
    x = logits.reshape(-1)
    y = label.reshape(-1)
    pad = (-n) % LANES
    if pad:
        # Ragged flat size: pad with exact zero-loss values (logits = -margin,
        # label = 0 -> loss == 0 for both hinges), so the reduction path needs
        # no element-level masking at all.
        # TODO(synk): this is one extra HBM pass over the inputs for ragged
        # sizes only; a truly copy-free ragged path would need a 1-D/manual-DMA
        # kernel (the common 128-aligned NCHW case is already copy-free).
        x = jnp.pad(x, (0, pad), constant_values=-margin)
        y = jnp.pad(y, (0, pad), constant_values=0)
    rows = (n + pad) // LANES
    x2 = x.reshape(rows, LANES)
    y2 = y.reshape(rows, LANES)

    beta_is_int = float(beta).is_integer()
    common = dict(a0=float(a0), a1=float(a1), b1=float(b1),
                  beta=float(beta), margin=float(margin), hinge=hinge)
    in_itemsize = x2.dtype.itemsize + y2.dtype.itemsize
    n_elems = rows * LANES
    in_bytes = n_elems * in_itemsize

    if reduction in ('mean', 'sum'):
        # Fused reduction: no (rows, 128) HBM loss store / re-read.
        n_par, inner, block_rows = _choose_tiling(rows, LANES * in_itemsize)
        acc_rows = SUBLANES if block_rows % SUBLANES == 0 else 1
        total_blocks = pl.cdiv(rows, block_rows)
        if n_par * inner > total_blocks:
            # A core's trailing step(s) would index past the last block; clamp
            # to the last valid block (its contribution is masked to zero).
            in_map = lambda p, i: (jnp.minimum(p * inner + i, total_blocks - 1), 0)
        else:
            in_map = lambda p, i: (p * inner + i, 0)

        kernel = functools.partial(
            _filter_loss_sum_kernel, rows=rows, block_rows=block_rows,
            inner=inner, acc_rows=acc_rows, **common)
        parts = pl.pallas_call(
            kernel,
            out_shape=jax.ShapeDtypeStruct((n_par, acc_rows, LANES), jnp.float32),
            grid_spec=pl.GridSpec(
                grid=(n_par, inner),
                in_specs=[pl.BlockSpec((block_rows, LANES), in_map),
                          pl.BlockSpec((block_rows, LANES), in_map)],
                out_specs=pl.BlockSpec((1, acc_rows, LANES),
                                       lambda p, i: (p, 0, 0)),
            ),
            compiler_params=pltpu.CompilerParams(
                dimension_semantics=("parallel", "arbitrary")),
            cost_estimate=pl.CostEstimate(
                flops=15 * n_elems,
                transcendentals=0 if beta_is_int else 2 * n_elems,
                bytes_accessed=in_bytes + n_par * acc_rows * LANES * 4),
        )(x2, y2)
        total = jnp.sum(parts)              # tiny (n_par, acc_rows, 128) finalize
        if reduction == 'mean':
            total = total / n
        return total.astype(out_dtype)

    # reduction == 'none': elementwise path.
    out_itemsize = jnp.dtype(out_dtype).itemsize
    _, _, block_rows = _choose_tiling(rows, LANES * (in_itemsize + out_itemsize))
    grid_size = pl.cdiv(rows, block_rows)
    kernel = functools.partial(_filter_loss_kernel, **common)
    out2 = pl.pallas_call(
        kernel,
        out_shape=jax.ShapeDtypeStruct((rows, LANES), out_dtype),
        grid_spec=pl.GridSpec(
            grid=(grid_size,),
            in_specs=[pl.BlockSpec((block_rows, LANES), lambda i: (i, 0)),
                      pl.BlockSpec((block_rows, LANES), lambda i: (i, 0))],
            out_specs=pl.BlockSpec((block_rows, LANES), lambda i: (i, 0)),
        ),
        compiler_params=pltpu.CompilerParams(
            dimension_semantics=("parallel",)),
        cost_estimate=pl.CostEstimate(
            flops=15 * n_elems,
            transcendentals=0 if beta_is_int else 2 * n_elems,
            bytes_accessed=in_bytes + n_elems * out_itemsize),
    )(x2, y2)

    loss = out2.reshape(-1)
    if pad:
        loss = loss[:n]
    return loss.reshape(orig_shape)


# ---------------------------------------------------------------------------
# Pure-JAX reference (mirrors the PyTorch forward exactly)
# ---------------------------------------------------------------------------
def _reference(logits, label, *, a0=0.1, a1=None, b1=1.0, beta=2.0,
               margin=1.0, reduction='none', hinge='ReLU'):
    a1 = (1.0 - a0) if a1 is None else a1
    x = logits.astype(jnp.float32)
    y = label.astype(jnp.float32)
    if hinge == 'ReLU':
        h = lambda v: jnp.maximum(v, 0.0)
    else:
        h = lambda v: jnp.where(v >= 0.0, v, 0.01 * v)
    loss0 = (1.0 - y) * a0 * h(x + margin)
    l1 = h(-x + margin)
    loss1 = y * (a1 * l1 + b1 * (jnp.power(l1 + 1.0, beta) - 1.0))
    loss = loss0 + loss1
    if reduction == 'mean':
        loss = loss.mean()
    if reduction == 'sum':
        loss = loss.sum()
    return loss


if __name__ == "__main__":
    key = jax.random.PRNGKey(0)
    kw = dict(a0=0.1, b1=1.0, beta=2.0, margin=1.0)

    # --- Test 1: segmentation-style (N, C, H, W), 128-aligned, 2 blocks -----
    k1, k2, key = jax.random.split(key, 3)
    shape = (2, 4, 16, 16)
    logits = jax.random.normal(k1, shape, dtype=jnp.float32) * 2.0
    label = (jax.random.uniform(k2, shape) > 0.5).astype(jnp.float32)

    out = filter_loss_with_logits(logits, label, reduction='none',
                                  hinge='ReLU', **kw)
    ref = _reference(logits, label, reduction='none', hinge='ReLU', **kw)
    assert out.shape == shape and out.dtype == ref.dtype
    assert jnp.allclose(out, ref, atol=1e-4, rtol=1e-5), (
        f"max abs err = {jnp.max(jnp.abs(out - ref))}")

    out_lr = filter_loss_with_logits(logits, label, reduction='none',
                                     hinge='LeakyReLU', **kw)
    ref_lr = _reference(logits, label, reduction='none', hinge='LeakyReLU', **kw)
    assert jnp.allclose(out_lr, ref_lr, atol=1e-4, rtol=1e-5)

    out_mean = filter_loss_with_logits(logits, label, reduction='mean',
                                       hinge='ReLU', **kw)
    ref_mean = _reference(logits, label, reduction='mean', hinge='ReLU', **kw)
    assert jnp.allclose(out_mean, ref_mean, atol=1e-4, rtol=1e-4), (
        f"mean: {out_mean} vs {ref_mean}")

    out_sum = filter_loss_with_logits(logits, label, reduction='sum',
                                      hinge='ReLU', **kw)
    ref_sum = _reference(logits, label, reduction='sum', hinge='ReLU', **kw)
    assert jnp.allclose(out_sum, ref_sum, atol=1e-3, rtol=1e-4), (
        f"sum: {out_sum} vs {ref_sum}")

    # --- Test 2: ragged flat size (zero-loss pad path, tiny single block) ---
    k3, k4, key = jax.random.split(key, 3)
    rshape = (3, 5, 7)
    rlogits = jax.random.normal(k3, rshape, dtype=jnp.float32) * 2.0
    rlabel = (jax.random.uniform(k4, rshape) > 0.5).astype(jnp.float32)
    rout = filter_loss_with_logits(rlogits, rlabel, reduction='none', **kw)
    rref = _reference(rlogits, rlabel, reduction='none', **kw)
    assert rout.shape == rshape
    assert jnp.allclose(rout, rref, atol=1e-4, rtol=1e-5)
    rsum = filter_loss_with_logits(rlogits, rlabel, reduction='sum', **kw)
    rsum_ref = _reference(rlogits, rlabel, reduction='sum', **kw)
    assert jnp.allclose(rsum, rsum_ref, atol=1e-3, rtol=1e-4)

    # --- Test 3: partial Pallas block (120 rows, 64-row blocks) -------------
    k5, k6, key = jax.random.split(key, 3)
    pshape = (15, 32, 32)            # 15360 elems = 120 rows of 128
    plogits = jax.random.normal(k5, pshape, dtype=jnp.float32) * 2.0
    plabel = (jax.random.uniform(k6, pshape) > 0.5).astype(jnp.float32)
    psum = filter_loss_with_logits(plogits, plabel, reduction='sum', **kw)
    psum_ref = _reference(plogits, plabel, reduction='sum', **kw)
    assert jnp.allclose(psum, psum_ref, atol=1e-3, rtol=1e-4), (
        f"partial-block sum: {psum} vs {psum_ref}")
    pmean = filter_loss_with_logits(plogits, plabel, reduction='mean', **kw)
    pmean_ref = _reference(plogits, plabel, reduction='mean', **kw)
    assert jnp.allclose(pmean, pmean_ref, atol=1e-4, rtol=1e-4)
    pnone = filter_loss_with_logits(plogits, plabel, reduction='none', **kw)
    pnone_ref = _reference(plogits, plabel, reduction='none', **kw)
    assert jnp.allclose(pnone, pnone_ref, atol=1e-4, rtol=1e-5)

    jax.block_until_ready((out, out_lr, out_mean, out_sum,
                           rout, rsum, psum, pmean, pnone))
    print("KERNEL_OK")
</pallas_src>

<mosaic_0001>
module attributes {stable_mosaic.version = 11 : i64} {
  func.func @_filter_loss_kernel(%arg0: i32, %arg1: memref<8x128xf32, #tpu.memory_space<vmem>>, %arg2: memref<8x128xf32, #tpu.memory_space<vmem>>, %arg3: memref<8x128xf32, #tpu.memory_space<vmem>>) attributes {dimension_semantics = [#tpu.dimension_semantics<parallel>], iteration_bounds = array<i64: 2>, scalar_prefetch = 0 : i64, scratch_operands = 0 : i64, tpu.core_type = #tpu.core_type<tc>, window_params = [{transform_indices = @transform_0, window_bounds = array<i64: 8, 128>}, {transform_indices = @transform_1, window_bounds = array<i64: 8, 128>}, {transform_indices = @transform_2, window_bounds = array<i64: 8, 128>}]} {
    %c0 = arith.constant 0 : index
    %c0_0 = arith.constant 0 : index
    %0 = vector.load %arg1[%c0, %c0_0] : memref<8x128xf32, #tpu.memory_space<vmem>>, vector<8x128xf32>
    %c0_1 = arith.constant 0 : index
    %c0_2 = arith.constant 0 : index
    %1 = vector.load %arg2[%c0_1, %c0_2] : memref<8x128xf32, #tpu.memory_space<vmem>>, vector<8x128xf32>
    %cst = arith.constant 1.000000e+00 : f32
    %2 = vector.broadcast %cst : f32 to vector<8x128xf32>
    %3 = arith.subf %2, %1 : vector<8x128xf32>
    %cst_3 = arith.constant 1.000000e-01 : f32
    %4 = vector.broadcast %cst_3 : f32 to vector<8x128xf32>
    %5 = arith.mulf %3, %4 : vector<8x128xf32>
    %cst_4 = arith.constant 1.000000e+00 : f32
    %6 = vector.broadcast %cst_4 : f32 to vector<8x128xf32>
    %7 = arith.addf %0, %6 : vector<8x128xf32>
    %cst_5 = arith.constant 0.000000e+00 : f32
    %8 = vector.broadcast %cst_5 : f32 to vector<8x128xf32>
    %9 = arith.maximumf %7, %8 : vector<8x128xf32>
    %10 = arith.mulf %5, %9 : vector<8x128xf32>
    %cst_6 = arith.constant 0.000000e+00 : f32
    %11 = vector.broadcast %cst_6 : f32 to vector<8x128xf32>
    %12 = arith.subf %11, %0 : vector<8x128xf32>
    %cst_7 = arith.constant 1.000000e+00 : f32
    %13 = vector.broadcast %cst_7 : f32 to vector<8x128xf32>
    %14 = arith.addf %12, %13 : vector<8x128xf32>
    %cst_8 = arith.constant 0.000000e+00 : f32
    %15 = vector.broadcast %cst_8 : f32 to vector<8x128xf32>
    %16 = arith.maximumf %14, %15 : vector<8x128xf32>
    %cst_9 = arith.constant 1.000000e+00 : f32
    %17 = vector.broadcast %cst_9 : f32 to vector<8x128xf32>
    %18 = arith.addf %16, %17 : vector<8x128xf32>
    %19 = arith.mulf %18, %18 : vector<8x128xf32>
    %cst_10 = arith.constant 0.899999976 : f32
    %20 = vector.broadcast %cst_10 : f32 to vector<8x128xf32>
    %21 = arith.mulf %20, %16 : vector<8x128xf32>
    %cst_11 = arith.constant 1.000000e+00 : f32
    %22 = vector.broadcast %cst_11 : f32 to vector<8x128xf32>
    %23 = arith.subf %19, %22 : vector<8x128xf32>
    %cst_12 = arith.constant 1.000000e+00 : f32
    %24 = vector.broadcast %cst_12 : f32 to vector<8x128xf32>
    %25 = arith.mulf %24, %23 : vector<8x128xf32>
    %26 = arith.addf %21, %25 : vector<8x128xf32>
    %27 = arith.mulf %1, %26 : vector<8x128xf32>
    %28 = arith.addf %10, %27 : vector<8x128xf32>
    %c0_13 = arith.constant 0 : index
    %c0_14 = arith.constant 0 : index
    %29 = vector.load %arg3[%c0_13, %c0_14] : memref<8x128xf32, #tpu.memory_space<vmem>>, vector<8x128xf32>
    tpu.vector_store %arg3[%c0_13, %c0_14], %28 {strides = array<i32>} : memref<8x128xf32, #tpu.memory_space<vmem>>, vector<8x128xf32>,
    return
  }
  func.func @transform_0(%arg0: i32) -> (i32, i32) {
    %c0_i32 = arith.constant 0 : i32
    %c0_i32_0 = arith.constant 0 : i32
    return %arg0, %c0_i32 : i32, i32
  }
  func.func @transform_1(%arg0: i32) -> (i32, i32) {
    %c0_i32 = arith.constant 0 : i32
    %c0_i32_0 = arith.constant 0 : i32
    return %arg0, %c0_i32 : i32, i32
  }
  func.func @transform_2(%arg0: i32) -> (i32, i32) {
    %c0_i32 = arith.constant 0 : i32
    %c0_i32_0 = arith.constant 0 : i32
    return %arg0, %c0_i32 : i32, i32
  }
}

</mosaic_0001>

<llo_original>
// kernel: tpu_custom_call.1
$region0: #{tpu_custom_call.1}
  #allocation0 [shape = 'u32[]', space=smem, size = 0x4, offset = 0x4, fixed_abs, tag = 'smem constant byte address 0x4 - core index']
  #allocation1 [shape = 'u32[72,128]{1,0:T(1,128)}', space=vmem, size = 0x9000, scoped, tag = 'internal scratch']
  %s0 = inlined_call_operand.hbm [shape: f32[16,128], index: 0, kind: input, shape index: {}]
  %s1 = inlined_call_operand.hbm [shape: f32[16,128], index: 1, kind: input, shape index: {}]
  %s2 = inlined_call_operand.hbm [shape: f32[16,128], index: 2, kind: output, shape index: {}]
  %s3 = sld [smem:[#allocation0]]
  $region49: #{tpu_custom_call.1} parent=0
    _
  %s5 = ssub.s32 1, %s3
  %s6 = scalar_select 0, %s5, %s3
  $region1: #{tpu_custom_call.1} parent=0
    #allocation2 [shape = 'u8[8192]{0}', space=vmem, size = 0x2000, scoped, tag = 'input window, operand 0']
    #allocation3 [shape = 's32[2]{0}', space=sflag, size = 0x8, scoped, tag = 'scoped memory for tpu_custom_call.1']
    #allocation4 [shape = 's32[2]{0}', space=sflag, size = 0x8, scoped, tag = 'scoped memory for tpu_custom_call.1']
    #allocation5 [shape = 'u8[8192]{0}', space=vmem, size = 0x2000, scoped, tag = 'input window, operand 1']
    #allocation6 [shape = 's32[2]{0}', space=sflag, size = 0x8, scoped, tag = 'scoped memory for tpu_custom_call.1']
    #allocation7 [shape = 'u8[8192]{0}', space=vmem, size = 0x2000, scoped, tag = 'output window, operand 0']
    %7 = vsyncpa [#allocation3], 0
    %s8 = scalar_lea.sflag [#allocation3], 1
    %9 = vsyncpa %s8, 0
    %10 = vsyncpa [#allocation6], 0
    %s11 = scalar_lea.sflag [#allocation6], 1
    %12 = vsyncpa %s11, 0
    %13 = vsyncpa [#allocation4], 0
    %s14 = scalar_lea.sflag [#allocation4], 1
    %15 = vsyncpa %s14, 0
    loop: start=0, step=1, limit=4
    $region2: #{tpu_custom_call.1} parent=1 // loop_pre_header
      _
    $region3: #{tpu_custom_call.1} parent=1 // loop_header
      %s17 = sphi 0, %s21
      %p18 = scmp.ge.s32.totalorder %s17, 4
      %s27 = sphi 0, %s29
      %s30 = sphi 0, %s27
      %s31 = sphi 0, %s30
      %s47 = sphi 0, %s31
      %s53 = sphi 0, %s55
      %s56 = sphi 0, %s53
      %s57 = sphi 0, %s56
      %s73 = sphi 0, %s57
      %s79 = sphi 0, %s81
      %s82 = sphi 0, %s79
      %s83 = sphi 0, %s82
      %s99 = sphi 0, %s83
    $region4: #{tpu_custom_call.1} parent=1 // loop_header_branch
      %20 = sbr.rel (%p18) target = $region8
    $region5: #{tpu_custom_call.1} parent=1 // loop_body
      %s22 = ssub.s32 %s17, 1
      %s23 = ssub.s32 %s17, 2
      %s24 = sadd.s32 %s17, 1
      %s25 = ssub.s32 %s17, %s24
      %p26 = scmp.eq.s32.totalorder %s25, 0
      %s28 = sadd.s32 %s27, 1
      %s29 = scalar_select %p26, %s27, %s28
      %p32 = pneg %p26
      %p33 = scmp.eq.s32.totalorder %s17, 1
      %p34 = por %p32, %p33
      %p35 = scmp.ne.s32.totalorder %s27, %s30
      %p36 = scmp.eq.s32.totalorder %s17, 0
      %p37 = por %p35, %p36
      %p38 = scmp.ne.s32.totalorder %s27, %s30
      %p39 = scmp.eq.s32.totalorder %s22, 1
      %p40 = por %p38, %p39
      %p41 = scmp.ne.s32.totalorder %s30, %s31
      %p42 = scmp.eq.s32.totalorder %s22, 0
      %p43 = por %p41, %p42
      %p44 = scmp.ne.s32.totalorder %s30, %s31
      %p45 = scmp.eq.s32.totalorder %s23, 1
      %p46 = por %p44, %p45
      %p48 = scmp.ne.s32.totalorder %s31, %s47
      %p49 = scmp.eq.s32.totalorder %s23, 0
      %p50 = por %p48, %p49
      %s51 = ssub.s32 %s17, %s24
      %p52 = scmp.eq.s32.totalorder %s51, 0
      %s54 = sadd.s32 %s53, 1
      %s55 = scalar_select %p52, %s53, %s54
      %p58 = pneg %p52
      %p59 = scmp.eq.s32.totalorder %s17, 1
      %p60 = por %p58, %p59
      %p61 = scmp.ne.s32.totalorder %s53, %s56
      %p62 = scmp.eq.s32.totalorder %s17, 0
      %p63 = por %p61, %p62
      %p64 = scmp.ne.s32.totalorder %s53, %s56
      %p65 = scmp.eq.s32.totalorder %s22, 1
      %p66 = por %p64, %p65
      %p67 = scmp.ne.s32.totalorder %s56, %s57
      %p68 = scmp.eq.s32.totalorder %s22, 0
      %p69 = por %p67, %p68
      %p70 = scmp.ne.s32.totalorder %s56, %s57
      %p71 = scmp.eq.s32.totalorder %s23, 1
      %p72 = por %p70, %p71
      %p74 = scmp.ne.s32.totalorder %s57, %s73
      %p75 = scmp.eq.s32.totalorder %s23, 0
      %p76 = por %p74, %p75
      %s77 = ssub.s32 %s17, %s24
      %p78 = scmp.eq.s32.totalorder %s77, 0
      %s80 = sadd.s32 %s79, 1
      %s81 = scalar_select %p78, %s79, %s80
      %p84 = pneg %p78
      %p85 = scmp.eq.s32.totalorder %s17, 1
      %p86 = por %p84, %p85
      %p87 = scmp.ne.s32.totalorder %s79, %s82
      %p88 = scmp.eq.s32.totalorder %s17, 0
      %p89 = por %p87, %p88
      %p90 = scmp.ne.s32.totalorder %s79, %s82
      %p91 = scmp.eq.s32.totalorder %s22, 1
      %p92 = por %p90, %p91
      %p93 = scmp.ne.s32.totalorder %s82, %s83
      %p94 = scmp.eq.s32.totalorder %s22, 0
      %p95 = por %p93, %p94
      %p96 = scmp.ne.s32.totalorder %s82, %s83
      %p97 = scmp.eq.s32.totalorder %s23, 1
      %p98 = por %p96, %p97
      %p100 = scmp.ne.s32.totalorder %s83, %s99
      %p101 = scmp.eq.s32.totalorder %s23, 0
      %p102 = por %p100, %p101
      %p103 = scmp.le.s32.totalorder 1, %s17
      %p104 = scmp.lt.s32.totalorder %s17, 3
      %p105 = pnand %p103, %p104
      %p106 = pneg %p105
      // Predicated region
      $region9: #{tpu_custom_call.1} parent=5 // pred_check
        _
      $region10: #{tpu_custom_call.1} parent=5 // pred_check_branch
        %108 = sbr.rel (%p105) target = $region12
      $region11: #{tpu_custom_call.1} parent=5 // pred_region
        %s109 = ssub.s32 %s17, 1
      $region12: #{tpu_custom_call.1} parent=5 // pred_fallthru
        _
      %p110 = scmp.lt.s32.totalorder %s17, 2
      // Predicated region
      $region13: #{tpu_custom_call.1} parent=5 // pred_check
        %p111 = pneg %p110
      $region14: #{tpu_custom_call.1} parent=5 // pred_check_branch
        %113 = sbr.rel (%p111) target = $region16
      $region15: #{tpu_custom_call.1} parent=5 // pred_region
        // Predicated region
        $region17: #{tpu_custom_call.1} parent=15 // pred_check
          %p114 = pneg %p37
        $region18: #{tpu_custom_call.1} parent=15 // pred_check_branch
          %116 = sbr.rel (%p114) target = $region20
        $region19: #{tpu_custom_call.1} parent=15 // pred_region
          %s117 = sand.u32 %s27, 1
          %s118 = scalar_lea.sflag [#allocation3], %s117
          %s119 = sand.u32 %s27, 1
          %s120 = smul.addr %s119, 8
          %s121 = scalar_lea.vmem [#allocation2], %s120
          %123 = vsyncadd %s118, 0
          %s124 = smul.addr %s17, 8
          %s125 = scalar_lea.hbm %s0, %s124
          %s127 = sshll.u32 %s125, 4
          %s128 = int_to_ptr.hbm [resolvable:$true] %s127
          %s129 = sshll.u32 %s121, 4
          %s130 = int_to_ptr.vmem [resolvable:$true] %s129
          %132 = dma.hbm_to_vmem [thread:$0]  %s128, 128, %s130, %s118
        $region20: #{tpu_custom_call.1} parent=15 // pred_fallthru
          _
        // Predicated region
        $region21: #{tpu_custom_call.1} parent=15 // pred_check
          %p133 = pneg %p63
        $region22: #{tpu_custom_call.1} parent=15 // pred_check_branch
          %135 = sbr.rel (%p133) target = $region24
        $region23: #{tpu_custom_call.1} parent=15 // pred_region
          %s136 = sand.u32 %s53, 1
          %s137 = scalar_lea.sflag [#allocation6], %s136
          %s138 = sand.u32 %s53, 1
          %s139 = smul.addr %s138, 8
          %s140 = scalar_lea.vmem [#allocation5], %s139
          %142 = vsyncadd %s137, 0
          %s143 = smul.addr %s17, 8
          %s144 = scalar_lea.hbm %s1, %s143
          %s146 = sshll.u32 %s144, 4
          %s147 = int_to_ptr.hbm [resolvable:$true] %s146
          %s148 = sshll.u32 %s140, 4
          %s149 = int_to_ptr.vmem [resolvable:$true] %s148
          %151 = dma.hbm_to_vmem [thread:$0]  %s147, 128, %s149, %s137
        $region24: #{tpu_custom_call.1} parent=15 // pred_fallthru
          _
      $region16: #{tpu_custom_call.1} parent=5 // pred_fallthru
        _
      %p152 = scmp.le.s32.totalorder 1, %s17
      %p153 = scmp.lt.s32.totalorder %s17, 3
      %p154 = pnand %p152, %p153
      %p155 = pneg %p154
      // Predicated region
      $region25: #{tpu_custom_call.1} parent=5 // pred_check
        _
      $region26: #{tpu_custom_call.1} parent=5 // pred_check_branch
        %157 = sbr.rel (%p154) target = $region28
      $region27: #{tpu_custom_call.1} parent=5 // pred_region
        %s158 = ssub.s32 %s17, 1
        %s159 = sand.u32 %s30, 1
        %s160 = scalar_lea.sflag [#allocation3], %s159
        %s161 = sand.u32 %s30, 1
        %s162 = smul.addr %s161, 8
        %s163 = scalar_lea.vmem [#allocation2], %s162
        // Predicated region
        $region29: #{tpu_custom_call.1} parent=27 // pred_check
          %p164 = pneg %p43
        $region30: #{tpu_custom_call.1} parent=27 // pred_check_branch
          %166 = sbr.rel (%p164) target = $region32
        $region31: #{tpu_custom_call.1} parent=27 // pred_region
          %168 = dma.done %s160, 128
        $region32: #{tpu_custom_call.1} parent=27 // pred_fallthru
          _
        %s169 = sand.u32 %s56, 1
        %s170 = scalar_lea.sflag [#allocation6], %s169
        %s171 = sand.u32 %s56, 1
        %s172 = smul.addr %s171, 8
        %s173 = scalar_lea.vmem [#allocation5], %s172
        // Predicated region
        $region33: #{tpu_custom_call.1} parent=27 // pred_check
          %p174 = pneg %p69
        $region34: #{tpu_custom_call.1} parent=27 // pred_check_branch
          %176 = sbr.rel (%p174) target = $region36
        $region35: #{tpu_custom_call.1} parent=27 // pred_region
          %178 = dma.done %s170, 128
        $region36: #{tpu_custom_call.1} parent=27 // pred_fallthru
          _
        %s179 = sand.u32 %s30, 1
        %s180 = scalar_lea.sflag [#allocation3], %s179
        %s181 = sand.u32 %s30, 1
        %s182 = smul.addr %s181, 8
        %s183 = scalar_lea.vmem [#allocation2], %s182
        %p184 = pneg %p43
        %p185 = pneg %p40
        %s186 = sand.u32 %s56, 1
        %s187 = scalar_lea.sflag [#allocation6], %s186
        %s188 = sand.u32 %s56, 1
        %s189 = smul.addr %s188, 8
        %s190 = scalar_lea.vmem [#allocation5], %s189
        %p191 = pneg %p69
        %p192 = pneg %p66
        %p193 = pneg %p95
        %p194 = pneg %p92
        %s195 = sand.u32 %s82, 1
        %s196 = scalar_lea.sflag [#allocation4], %s195
        %s197 = sand.u32 %s82, 1
        %s198 = smul.addr %s197, 8
        %s199 = scalar_lea.vmem [#allocation7], %s198
        %v200 = vld [vmem:[%s163] sm:$0xff]
        %v201 = vld [vmem:[%s173] sm:$0xff]
        %v202 = vsub.f32 1.0, %v201
        %v203 = vmul.f32 %v202, 0.1
        %v204 = vadd.f32 %v200, 1.0
        %v205 = vmax.f32 %v204, 0.0
        %v206 = vmul.f32 %v203, %v205
        %v207 = vsub.f32 0.0, %v200
        %v208 = vadd.f32 %v207, 1.0
        %v209 = vmax.f32 %v208, 0.0
        %v210 = vadd.f32 %v209, 1.0
        %v211 = vmul.f32 %v210, %v210
        %v212 = vmul.f32 %v209, 0.9
        %v213 = vsub.f32 %v211, 1.0
        %v214 = vadd.f32 %v212, %v213
        %v215 = vmul.f32 %v201, %v214
        %v216 = vadd.f32 %v206, %v215
        %217 = vst [vmem:[%s199] sm:$0xff] %v216
        %s218 = sand.u32 %s82, 1
        %s219 = scalar_lea.sflag [#allocation4], %s218
        %s220 = sand.u32 %s82, 1
        %s221 = smul.addr %s220, 8
        %s222 = scalar_lea.vmem [#allocation7], %s221
        // Predicated region
        $region37: #{tpu_custom_call.1} parent=27 // pred_check
          %p223 = pneg %p92
        $region38: #{tpu_custom_call.1} parent=27 // pred_check_branch
          %225 = sbr.rel (%p223) target = $region40
        $region39: #{tpu_custom_call.1} parent=27 // pred_region
          %227 = vsyncadd %s219, 0
          %s228 = smul.addr %s22, 8
          %s229 = scalar_lea.hbm %s2, %s228
          %s231 = sshll.u32 %s222, 4
          %s232 = int_to_ptr.vmem [resolvable:$true] %s231
          %s233 = sshll.u32 %s229, 4
          %s234 = int_to_ptr.hbm [resolvable:$true] %s233
          %236 = dma.vmem_to_hbm [thread:$0]  %s232, 128, %s234, %s219
        $region40: #{tpu_custom_call.1} parent=27 // pred_fallthru
          _
      $region28: #{tpu_custom_call.1} parent=5 // pred_fallthru
        _
      %p237 = scmp.le.s32.totalorder 2, %s17
      // Predicated region
      $region41: #{tpu_custom_call.1} parent=5 // pred_check
        %p238 = pneg %p237
      $region42: #{tpu_custom_call.1} parent=5 // pred_check_branch
        %240 = sbr.rel (%p238) target = $region44
      $region43: #{tpu_custom_call.1} parent=5 // pred_region
        %s241 = ssub.s32 %s17, 2
        // Predicated region
        $region45: #{tpu_custom_call.1} parent=43 // pred_check
          %p242 = pneg %p98
        $region46: #{tpu_custom_call.1} parent=43 // pred_check_branch
          %244 = sbr.rel (%p242) target = $region48
        $region47: #{tpu_custom_call.1} parent=43 // pred_region
          %s245 = sand.u32 %s83, 1
          %s246 = scalar_lea.sflag [#allocation4], %s245
          %s247 = sand.u32 %s83, 1
          %s248 = smul.addr %s247, 8
          %s249 = scalar_lea.vmem [#allocation7], %s248
          %251 = dma.done %s246, 128
        $region48: #{tpu_custom_call.1} parent=43 // pred_fallthru
          _
      $region44: #{tpu_custom_call.1} parent=5 // pred_fallthru
        _
    $region6: #{tpu_custom_call.1} parent=1 // loop_footer
      %s21 = sadd.s32 1, %s17
    $region7: #{tpu_custom_call.1} parent=1 // loop_footer_branch
      %16 = sbr.rel target = $region3
    $region8: #{tpu_custom_call.1} parent=1 // loop_exit
      _
    %252 = vsyncpa [#allocation3], 1
    %s253 = scalar_lea.sflag [#allocation3], 1
    %254 = vsyncpa %s253, 1
    %255 = vsyncpa [#allocation6], 1
    %s256 = scalar_lea.sflag [#allocation6], 1
    %257 = vsyncpa %s256, 1
    %258 = vsyncpa [#allocation4], 1
    %s259 = scalar_lea.sflag [#allocation4], 1
    %260 = vsyncpa %s259, 1

</llo_original>
